<compile_context>
chip_gen: v7x
topology: tpu7x:2x2x1
jax: 0.10.0
libtpu: 0.0.40
codegen_flags: <defaults>
</compile_context>

<pallas_src>
import functools

import jax
import jax.numpy as jnp
from jax.experimental import pallas as pl
from jax.experimental.pallas import tpu as pltpu

# Packed-parameter layout (single f32 (312, 96) array, grid-invariant):
#   rows   0:128 : block-diag of 16 copies of W1 (8x6)  -> (128, 96)
#   rows 128:224 : block-diag of 16 copies of W2 (6x4)  -> ( 96, 64) in cols 0:64
#   rows 224:288 : block-diag of 16 copies of W3 (4x1)  -> ( 64, 16) in cols 0:16
#   row  288     : b1 tiled 16x  (96 cols)
#   row  296     : b2 tiled 16x  (cols 0:64)
#   row  304     : b3 tiled 16x  (cols 0:16)
_P_ROWS, _P_COLS = 312, 96
_SPR = 16                      # samples per 128-lane row (16 * 8 features)


def _sigmoid(z):
    # sigmoid(z) = 0.5*tanh(0.5*z) + 0.5 : a single EUP transcendental.
    return 0.5 * jnp.tanh(0.5 * z) + 0.5


def _mlp_kernel(x_ref, p_ref, o_ref):
    # x_ref: (TR, 128)  16 samples per row, 8 features each (natural row-major)
    # p_ref: (312, 96)  packed block-diagonal weights + tiled biases
    # o_ref: (TR, 16)   one sigmoid output per sample
    x = x_ref[...]

    w1 = p_ref[0:128, :]                 # (128, 96)
    w2 = p_ref[128:224, :][:, :64]       # (96, 64)
    w3 = p_ref[224:288, :][:, :16]       # (64, 16)
    b1 = p_ref[288:289, :]               # (1, 96)
    b2 = p_ref[296:297, :][:, :64]       # (1, 64)
    b3 = p_ref[304:305, :][:, :16]       # (1, 16)

    # Layer 1: per-sample 6 features land at cols 6j:6j+6.
    h1 = _sigmoid(jnp.dot(x, w1, preferred_element_type=jnp.float32) + b1)
    # Layer 2: per-sample 4 features at cols 4j:4j+4.
    h2 = _sigmoid(jnp.dot(h1, w2, preferred_element_type=jnp.float32) + b2)
    # Layer 3: per-sample scalar at col j.
    z3 = jnp.dot(h2, w3, preferred_element_type=jnp.float32) + b3
    o_ref[...] = _sigmoid(z3).astype(o_ref.dtype)


def _pack_params(w1, b1, w2, b2, w3, b3):
    eye16 = jnp.eye(_SPR, dtype=jnp.float32)
    p = jnp.zeros((_P_ROWS, _P_COLS), jnp.float32)
    p = p.at[0:128, 0:96].set(jnp.kron(eye16, w1.astype(jnp.float32)))
    p = p.at[128:224, 0:64].set(jnp.kron(eye16, w2.astype(jnp.float32)))
    p = p.at[224:288, 0:16].set(jnp.kron(eye16, w3.astype(jnp.float32)))
    p = p.at[288, 0:96].set(jnp.tile(b1.reshape(1, -1), (1, _SPR))[0])
    p = p.at[296, 0:64].set(jnp.tile(b2.reshape(1, -1), (1, _SPR))[0])
    p = p.at[304, 0:16].set(jnp.tile(b3.reshape(1, -1), (1, _SPR))[0])
    return p


@functools.partial(jax.jit, static_argnames=("tile_batch",))
def mlp_forward(x, w1, b1, w2, b2, w3, b3, *, tile_batch=32768):
    """Forward pass of the 8->6->4->1 sigmoid MLP.

    x:  (B, 8) float32
    w*: (in_features, out_features)   b*: (1, out_features)
    Returns (B, 1) float32 (same semantics as the PyTorch module).
    """
    B = x.shape[0]
    x = x.astype(jnp.float32)

    # Rows of 16 samples (128 lanes each).
    R = pl.cdiv(B, _SPR)

    # Row tile: big enough that per-step HBM traffic (~64*16*tr bytes) dwarfs
    # the ~0.35 us per-grid-step overhead; capped at 65536 samples for v5e.
    tr = max(8, min(int(tile_batch), 65536) // _SPR)
    tr = pl.cdiv(tr, 8) * 8
    tr = min(tr, pl.cdiv(R, 8) * 8)              # don't over-pad tiny batches
    if R >= 16:
        # v7x: keep >= 2 grid steps so both TensorCores get work.
        tr = min(tr, pl.cdiv(pl.cdiv(R, 2), 8) * 8)

    r_pad = pl.cdiv(R, tr) * tr
    b_pad = r_pad * _SPR

    if b_pad == B:
        # Natural (B, 8) row-major reinterpreted as (B/16, 128): free, no copy.
        x_rows = x.reshape(r_pad, 8 * _SPR)
    else:
        # Ragged batch: a single padding pass over x (only path that copies x).
        x_rows = (
            jnp.zeros((b_pad, 8), jnp.float32).at[:B].set(x)
            .reshape(r_pad, 8 * _SPR)
        )

    params = _pack_params(w1, b1, w2, b2, w3, b3)

    y_rows = pl.pallas_call(
        _mlp_kernel,
        out_shape=jax.ShapeDtypeStruct((r_pad, _SPR), jnp.float32),
        grid=(r_pad // tr,),
        in_specs=[
            pl.BlockSpec((tr, 8 * _SPR), lambda i: (i, 0)),     # x streams
            pl.BlockSpec((_P_ROWS, _P_COLS), lambda i: (0, 0)),  # params resident
        ],
        out_specs=pl.BlockSpec((tr, _SPR), lambda i: (i, 0)),
        compiler_params=pltpu.CompilerParams(
            dimension_semantics=("parallel",),       # v7x: shard batch over 2 TCs
            vmem_limit_bytes=32 * 1024 * 1024,       # safe on v5e/v6e/v7x
        ),
    )(x_rows, params)

    # (r_pad, 16) -> (b_pad, 1) is a free row-major reshape; slice drops padding.
    return y_rows.reshape(b_pad, 1)[:B]


def init_params(key):
    """Deterministic init mimicking torch.nn.Linear (uniform +/- 1/sqrt(fan_in)).

    Weights stored as (in_features, out_features); biases as (1, out)."""
    ks = jax.random.split(key, 6)

    def lin(kw, kb, fan_in, fan_out):
        bound = 1.0 / jnp.sqrt(fan_in)
        w = jax.random.uniform(kw, (fan_in, fan_out), jnp.float32, -bound, bound)
        b = jax.random.uniform(kb, (1, fan_out), jnp.float32, -bound, bound)
        return w, b

    w1, b1 = lin(ks[0], ks[1], 8, 6)
    w2, b2 = lin(ks[2], ks[3], 6, 4)
    w3, b3 = lin(ks[4], ks[5], 4, 1)
    return w1, b1, w2, b2, w3, b3


def _reference(x, params):
    w1, b1, w2, b2, w3, b3 = params
    return jax.nn.sigmoid(
        jax.nn.sigmoid(jax.nn.sigmoid(x @ w1 + b1) @ w2 + b2) @ w3 + b3
    )


if __name__ == "__main__":
    key = jax.random.PRNGKey(0)
    k_x, k_p = jax.random.split(key)
    params = init_params(k_p)

    # Small batch (single tile, padded to 8 rows of 16 samples).
    B = 8
    x = jax.random.normal(k_x, (B, 8), jnp.float32)
    y = mlp_forward(x, *params)
    jax.block_until_ready(y)
    assert y.shape == (B, 1)
    assert jnp.allclose(y, _reference(x, params), atol=1e-5), "mismatch (B=8)"

    # Aligned batch: zero-copy reshape path, 2 grid steps (both v7x cores busy).
    B2 = 4096
    x2 = jax.random.normal(k_x, (B2, 8), jnp.float32)
    y2 = mlp_forward(x2, *params)
    jax.block_until_ready(y2)
    assert y2.shape == (B2, 1)
    assert jnp.allclose(y2, _reference(x2, params), atol=1e-5), "mismatch (B=4096)"

    # Ragged batch with several grid steps (exercises padding + pipelining).
    B3 = 300
    x3 = jax.random.normal(k_x, (B3, 8), jnp.float32)
    y3 = mlp_forward(x3, *params, tile_batch=128)   # 8-row tiles, 3 grid steps
    jax.block_until_ready(y3)
    assert y3.shape == (B3, 1)
    assert jnp.allclose(y3, _reference(x3, params), atol=1e-5), "mismatch (B=300)"

    print("KERNEL_OK")
</pallas_src>

<mosaic_0001>
module attributes {stable_mosaic.version = 11 : i64} {
  func.func @_mlp_kernel(%arg0: i32, %arg1: memref<8x128xf32, #tpu.memory_space<vmem>>, %arg2: memref<312x96xf32, #tpu.memory_space<vmem>>, %arg3: memref<8x16xf32, #tpu.memory_space<vmem>>) attributes {dimension_semantics = [#tpu.dimension_semantics<parallel>], iteration_bounds = array<i64: 1>, scalar_prefetch = 0 : i64, scratch_operands = 0 : i64, tpu.core_type = #tpu.core_type<tc>, window_params = [{transform_indices = @transform_0, window_bounds = array<i64: 8, 128>}, {pipeline_mode = #tpu.pipeline_mode<synchronous>, transform_indices = @transform_1, window_bounds = array<i64: 312, 96>}, {transform_indices = @transform_2, window_bounds = array<i64: 8, 16>}]} {
    %c0 = arith.constant 0 : index
    %c0_0 = arith.constant 0 : index
    %0 = vector.load %arg1[%c0, %c0_0] : memref<8x128xf32, #tpu.memory_space<vmem>>, vector<8x128xf32>
    %c0_1 = arith.constant 0 : index
    %c0_2 = arith.constant 0 : index
    %1 = vector.load %arg2[%c0_1, %c0_2] : memref<312x96xf32, #tpu.memory_space<vmem>>, vector<128x96xf32>
    %c128 = arith.constant 128 : index
    %c0_3 = arith.constant 0 : index
    %2 = vector.load %arg2[%c128, %c0_3] : memref<312x96xf32, #tpu.memory_space<vmem>>, vector<96x96xf32>
    %3 = vector.extract_strided_slice %2 {offsets = [0, 0], sizes = [96, 64], strides = [1, 1]} : vector<96x96xf32> to vector<96x64xf32>
    %c224 = arith.constant 224 : index
    %c0_4 = arith.constant 0 : index
    %4 = vector.load %arg2[%c224, %c0_4] : memref<312x96xf32, #tpu.memory_space<vmem>>, vector<64x96xf32>
    %5 = vector.extract_strided_slice %4 {offsets = [0, 0], sizes = [64, 16], strides = [1, 1]} : vector<64x96xf32> to vector<64x16xf32>
    %c288 = arith.constant 288 : index
    %c0_5 = arith.constant 0 : index
    %6 = vector.load %arg2[%c288, %c0_5] : memref<312x96xf32, #tpu.memory_space<vmem>>, vector<1x96xf32>
    %c296 = arith.constant 296 : index
    %c0_6 = arith.constant 0 : index
    %7 = vector.load %arg2[%c296, %c0_6] : memref<312x96xf32, #tpu.memory_space<vmem>>, vector<1x96xf32>
    %8 = vector.extract_strided_slice %7 {offsets = [0, 0], sizes = [1, 64], strides = [1, 1]} : vector<1x96xf32> to vector<1x64xf32>
    %c304 = arith.constant 304 : index
    %c0_7 = arith.constant 0 : index
    %9 = vector.load %arg2[%c304, %c0_7] : memref<312x96xf32, #tpu.memory_space<vmem>>, vector<1x96xf32>
    %10 = vector.extract_strided_slice %9 {offsets = [0, 0], sizes = [1, 16], strides = [1, 1]} : vector<1x96xf32> to vector<1x16xf32>
    %cst = arith.constant dense<0.000000e+00> : vector<8x96xf32>
    %11 = tpu.matmul %0, %1, %cst {dimension_numbers = #tpu.dot_dimension_numbers<[1], [0], [0], [1], [0, 0, 1, 1], [], []>} : vector<8x128xf32>, vector<128x96xf32>, vector<8x96xf32> -> vector<8x96xf32>
    %12 = vector.broadcast %6 : vector<1x96xf32> to vector<8x96xf32>
    %13 = arith.addf %11, %12 : vector<8x96xf32>
    %cst_8 = arith.constant 5.000000e-01 : f32
    %14 = vector.broadcast %cst_8 : f32 to vector<8x96xf32>
    %15 = arith.mulf %14, %13 : vector<8x96xf32>
    %16 = math.tanh %15 : vector<8x96xf32>
    %cst_9 = arith.constant 5.000000e-01 : f32
    %17 = vector.broadcast %cst_9 : f32 to vector<8x96xf32>
    %18 = arith.mulf %17, %16 : vector<8x96xf32>
    %cst_10 = arith.constant 5.000000e-01 : f32
    %19 = vector.broadcast %cst_10 : f32 to vector<8x96xf32>
    %20 = arith.addf %18, %19 : vector<8x96xf32>
    %cst_11 = arith.constant dense<0.000000e+00> : vector<8x64xf32>
    %21 = tpu.matmul %20, %3, %cst_11 {dimension_numbers = #tpu.dot_dimension_numbers<[1], [0], [0], [1], [0, 0, 1, 1], [], []>} : vector<8x96xf32>, vector<96x64xf32>, vector<8x64xf32> -> vector<8x64xf32>
    %22 = vector.broadcast %8 : vector<1x64xf32> to vector<8x64xf32>
    %23 = arith.addf %21, %22 : vector<8x64xf32>
    %cst_12 = arith.constant 5.000000e-01 : f32
    %24 = vector.broadcast %cst_12 : f32 to vector<8x64xf32>
    %25 = arith.mulf %24, %23 : vector<8x64xf32>
    %26 = math.tanh %25 : vector<8x64xf32>
    %cst_13 = arith.constant 5.000000e-01 : f32
    %27 = vector.broadcast %cst_13 : f32 to vector<8x64xf32>
    %28 = arith.mulf %27, %26 : vector<8x64xf32>
    %cst_14 = arith.constant 5.000000e-01 : f32
    %29 = vector.broadcast %cst_14 : f32 to vector<8x64xf32>
    %30 = arith.addf %28, %29 : vector<8x64xf32>
    %cst_15 = arith.constant dense<0.000000e+00> : vector<8x16xf32>
    %31 = tpu.matmul %30, %5, %cst_15 {dimension_numbers = #tpu.dot_dimension_numbers<[1], [0], [0], [1], [0, 0, 1, 1], [], []>} : vector<8x64xf32>, vector<64x16xf32>, vector<8x16xf32> -> vector<8x16xf32>
    %32 = vector.broadcast %10 : vector<1x16xf32> to vector<8x16xf32>
    %33 = arith.addf %31, %32 : vector<8x16xf32>
    %cst_16 = arith.constant 5.000000e-01 : f32
    %34 = vector.broadcast %cst_16 : f32 to vector<8x16xf32>
    %35 = arith.mulf %34, %33 : vector<8x16xf32>
    %36 = math.tanh %35 : vector<8x16xf32>
    %cst_17 = arith.constant 5.000000e-01 : f32
    %37 = vector.broadcast %cst_17 : f32 to vector<8x16xf32>
    %38 = arith.mulf %37, %36 : vector<8x16xf32>
    %cst_18 = arith.constant 5.000000e-01 : f32
    %39 = vector.broadcast %cst_18 : f32 to vector<8x16xf32>
    %40 = arith.addf %38, %39 : vector<8x16xf32>
    %c0_19 = arith.constant 0 : index
    %c0_20 = arith.constant 0 : index
    %41 = vector.load %arg3[%c0_19, %c0_20] : memref<8x16xf32, #tpu.memory_space<vmem>>, vector<8x16xf32>
    tpu.vector_store %arg3[%c0_19, %c0_20], %40 {strides = array<i32>} : memref<8x16xf32, #tpu.memory_space<vmem>>, vector<8x16xf32>,
    return
  }
  func.func @transform_0(%arg0: i32) -> (i32, i32) {
    %c0_i32 = arith.constant 0 : i32
    %c0_i32_0 = arith.constant 0 : i32
    return %arg0, %c0_i32 : i32, i32
  }
  func.func @transform_1(%arg0: i32) -> (i32, i32) {
    %c0_i32 = arith.constant 0 : i32
    %c0_i32_0 = arith.constant 0 : i32
    %c0_i32_1 = arith.constant 0 : i32
    return %c0_i32, %c0_i32_0 : i32, i32
  }
  func.func @transform_2(%arg0: i32) -> (i32, i32) {
    %c0_i32 = arith.constant 0 : i32
    %c0_i32_0 = arith.constant 0 : i32
    return %arg0, %c0_i32 : i32, i32
  }
}

</mosaic_0001>

<llo_original>
// kernel: mlp_forward.1
$region0: #{mlp_forward.1}
  #allocation0 [shape = 'u32[]', space=smem, size = 0x4, offset = 0x4, fixed_abs, tag = 'smem constant byte address 0x4 - core index']
  #allocation1 [shape = 'u32[144,128]{1,0:T(1,128)}', space=vmem, size = 0x12000, scoped, tag = 'internal scratch']
  %s0 = inlined_call_operand.vmem [shape: f32[8,128], index: 0, kind: input, shape index: {}]
  %s1 = inlined_call_operand.vmem [shape: f32[312,96], index: 1, kind: input, shape index: {}]
  %s2 = inlined_call_operand.vmem [shape: f32[8,16], index: 2, kind: output, shape index: {}]
  %s3 = sld [smem:[#allocation0]]
  $region18: #{mlp_forward.1} parent=0
    _
  %s5 = ssub.s32 1, %s3
  %s6 = scalar_select 0, %s5, %s3
  // Predicated region
  $region2: #{mlp_forward.1} parent=0 // pred_check
    _
  $region3: #{mlp_forward.1} parent=0 // pred_check_branch
    %8 = sbr.rel (0) target = $region5
  $region4: #{mlp_forward.1} parent=0 // pred_region
    _
  $region5: #{mlp_forward.1} parent=0 // pred_fallthru
    _
  // Predicated region
  $region6: #{mlp_forward.1} parent=0 // pred_check
    _
  $region7: #{mlp_forward.1} parent=0 // pred_check_branch
    %10 = sbr.rel (0) target = $region9
  $region8: #{mlp_forward.1} parent=0 // pred_region
    _
  $region9: #{mlp_forward.1} parent=0 // pred_fallthru
    _
  %v11 = vld [vmem:[%s0] sm:$0xff]
  %v12 = vld [vmem:[%s1] sm:$0xff]
  %v13 = vld [vmem:[%s1 + $0x8] sm:$0xff]
  %v14 = vld [vmem:[%s1 + $0x10] sm:$0xff]
  %v15 = vld [vmem:[%s1 + $0x18] sm:$0xff]
  %v16 = vld [vmem:[%s1 + $0x20] sm:$0xff]
  %v17 = vld [vmem:[%s1 + $0x28] sm:$0xff]
  %v18 = vld [vmem:[%s1 + $0x30] sm:$0xff]
  %v19 = vld [vmem:[%s1 + $0x38] sm:$0xff]
  %v20 = vld [vmem:[%s1 + $0x40] sm:$0xff]
  %v21 = vld [vmem:[%s1 + $0x48] sm:$0xff]
  %v22 = vld [vmem:[%s1 + $0x50] sm:$0xff]
  %v23 = vld [vmem:[%s1 + $0x58] sm:$0xff]
  %v24 = vld [vmem:[%s1 + $0x60] sm:$0xff]
  %v25 = vld [vmem:[%s1 + $0x68] sm:$0xff]
  %v26 = vld [vmem:[%s1 + $0x70] sm:$0xff]
  %v27 = vld [vmem:[%s1 + $0x78] sm:$0xff]
  %v28 = vld [vmem:[%s1 + $0x80] sm:$0xff]
  %v29 = vld [vmem:[%s1 + $0x88] sm:$0xff]
  %v30 = vld [vmem:[%s1 + $0x90] sm:$0xff]
  %v31 = vld [vmem:[%s1 + $0x98] sm:$0xff]
  %v32 = vld [vmem:[%s1 + $0xa0] sm:$0xff]
  %v33 = vld [vmem:[%s1 + $0xa8] sm:$0xff]
  %v34 = vld [vmem:[%s1 + $0xb0] sm:$0xff]
  %v35 = vld [vmem:[%s1 + $0xb8] sm:$0xff]
  %v36 = vld [vmem:[%s1 + $0xc0] sm:$0xff]
  %v37 = vld [vmem:[%s1 + $0xc8] sm:$0xff]
  %v38 = vld [vmem:[%s1 + $0xd0] sm:$0xff]
  %v39 = vld [vmem:[%s1 + $0xd8] sm:$0xff]
  %v40 = vld [vmem:[%s1 + $0xe0] sm:$0xff]
  %v41 = vld [vmem:[%s1 + $0xe8] sm:$0xff]
  %v42 = vld [vmem:[%s1 + $0xf0] sm:$0xff]
  %v43 = vld [vmem:[%s1 + $0xf8] sm:$0xff]
  %v44 = vld [vmem:[%s1 + $0x100] sm:$0xff]
  %v45 = vld [vmem:[%s1 + $0x108] sm:$0xff]
  %v46 = vld [vmem:[%s1 + $0x110] sm:$0xff]
  %v47 = vld [vmem:[%s1 + $0x118] sm:$0xff]
  %v48 = vld [vmem:[%s1 + $0x120] sm:$0x1]
  %v49 = vld [vmem:[%s1 + $0x128] sm:$0x1]
  %v50 = vld [vmem:[%s1 + $0x130] sm:$0x1]
  %v51 = vlaneseq
  %v52 = vshrl.u32 %v51, 7
  %v53 = vsub.s32 0, %v52
  %v54 = vrot.slane %v48, %v53
  %55 = vmatprep.subr.mxu0 0.0
  %56 = vmatpush1.msra.mxu0 %v12
  %57 = vmatprep.subr.mxu0 0.0
  %58 = vmatpush1.msra.mxu0 %v13
  %59 = vmatprep.subr.mxu0 0.0
  %60 = vmatpush1.msra.mxu0 %v14
  %61 = vmatprep.subr.mxu0 0.0
  %62 = vmatpush1.msra.mxu0 %v15
  %63 = vmatprep.subr.mxu0 0.0
  %64 = vmatpush1.msra.mxu0 %v16
  %65 = vmatprep.subr.mxu0 0.0
  %66 = vmatpush1.msra.mxu0 %v17
  %67 = vmatprep.subr.mxu0 0.0
  %68 = vmatpush1.msra.mxu0 %v18
  %69 = vmatprep.subr.mxu0 0.0
  %70 = vmatpush1.msra.mxu0 %v19
  %71 = vmatprep.subr.mxu0 0.0
  %72 = vmatpush1.msra.mxu0 %v20
  %73 = vmatprep.subr.mxu0 0.0
  %74 = vmatpush1.msra.mxu0 %v21
  %75 = vmatprep.subr.mxu0 0.0
  %76 = vmatpush1.msra.mxu0 %v22
  %77 = vmatprep.subr.mxu0 0.0
  %78 = vmatpush1.msra.mxu0 %v23
  %79 = vmatprep.subr.mxu0 0.0
  %80 = vmatpush1.msra.mxu0 %v24
  %81 = vmatprep.subr.mxu0 0.0
  %82 = vmatpush1.msra.mxu0 %v25
  %83 = vmatprep.subr.mxu0 0.0
  %84 = vmatpush1.msra.mxu0 %v26
  %85 = vmatprep.subr.mxu0 0.0
  %86 = vmatpush1.msra.mxu0 %v27
  %87 = vmatprep.subr.mxu0 0.0
  %88 = vmatpush1.msra.mxu0 0.0
  %89 = vmatprep.subr.mxu0 0.0
  %90 = vmatpush1.msra.mxu0 0.0
  %91 = vmatprep.subr.mxu0 0.0
  %92 = vmatpush1.msra.mxu0 0.0
  %93 = vmatprep.subr.mxu0 0.0
  %94 = vmatpush1.msra.mxu0 0.0
  %95 = vmatprep.subr.mxu0 0.0
  %96 = vmatpush1.msra.mxu0 0.0
  %97 = vmatprep.subr.mxu0 0.0
  %98 = vmatpush1.msra.mxu0 0.0
  %99 = vmatprep.subr.mxu0 0.0
  %100 = vmatpush1.msra.mxu0 0.0
  %101 = vmatprep.subr.mxu0 0.0
  %102 = vmatpush1.msra.mxu0 0.0
  %103 = vmatprep.subr.mxu0 0.0
  %104 = vmatpush1.msra.mxu0 0.0
  %105 = vmatprep.subr.mxu0 0.0
  %106 = vmatpush1.msra.mxu0 0.0
  %107 = vmatprep.subr.mxu0 0.0
  %108 = vmatpush1.msra.mxu0 0.0
  %109 = vmatprep.subr.mxu0 0.0
  %110 = vmatpush1.msra.mxu0 0.0
  %111 = vmatprep.subr.mxu0 0.0
  %112 = vmatpush1.msra.mxu0 0.0
  %113 = vmatprep.subr.mxu0 0.0
  %114 = vmatpush1.msra.mxu0 0.0
  %115 = vmatprep.subr.mxu0 0.0
  %116 = vmatpush1.msra.mxu0 0.0
  %117 = vmatprep.subr.mxu0 0.0
  %118 = vmatpush1.msra.mxu0 0.0
  %119 = vmatprep.mubr.f32.mxu0 0.0
  %120 = vmatmul.mubr.f32.gmra.mrb[0].mxu0 %v11
  %v121 = vpop.f32.mrb[0].mxu0
  %v122 = vadd.f32 %v54, %v121
  %v123 = vpop.f32.mrb[0].mxu0
  %124 = vdwg.mxu0
  %v125 = vmul.f32 %v122, 0.5
  %v126 = vtanh.pop %v125
  %v127 = vmul.f32 %v126, 0.5
  %v128 = vadd.f32 %v127, 0.5
  %v129 = vlaneseq
  %v130 = vshrl.u32 %v129, 7
  %v131 = vsub.s32 0, %v130
  %v132 = vrot.slane %v49, %v131
  %vm133 = vcmask 785408
  %v135 = vsel %vm133, %v128, 0
  %137 = vmatprep.subr.mxu0 0.0
  %138 = vmatpush1.msra.mxu0 %v28
  %139 = vmatprep.subr.mxu0 0.0
  %140 = vmatpush1.msra.mxu0 %v29
  %141 = vmatprep.subr.mxu0 0.0
  %142 = vmatpush1.msra.mxu0 %v30
  %143 = vmatprep.subr.mxu0 0.0
  %144 = vmatpush1.msra.mxu0 %v31
  %145 = vmatprep.subr.mxu0 0.0
  %146 = vmatpush1.msra.mxu0 %v32
  %147 = vmatprep.subr.mxu0 0.0
  %148 = vmatpush1.msra.mxu0 %v33
  %149 = vmatprep.subr.mxu0 0.0
  %150 = vmatpush1.msra.mxu0 %v34
  %151 = vmatprep.subr.mxu0 0.0
  %152 = vmatpush1.msra.mxu0 %v35
  %153 = vmatprep.subr.mxu0 0.0
  %154 = vmatpush1.msra.mxu0 %v36
  %155 = vmatprep.subr.mxu0 0.0
  %156 = vmatpush1.msra.mxu0 %v37
  %157 = vmatprep.subr.mxu0 0.0
  %158 = vmatpush1.msra.mxu0 %v38
  %159 = vmatprep.subr.mxu0 0.0
  %160 = vmatpush1.msra.mxu0 %v39
  %161 = vmatprep.subr.mxu0 0.0
  %162 = vmatpush1.msra.mxu0 0.0
  %163 = vmatprep.subr.mxu0 0.0
  %164 = vmatpush1.msra.mxu0 0.0
  %165 = vmatprep.subr.mxu0 0.0
  %166 = vmatpush1.msra.mxu0 0.0
  %167 = vmatprep.subr.mxu0 0.0
  %168 = vmatpush1.msra.mxu0 0.0
  %169 = vmatprep.subr.mxu0 0.0
  %170 = vmatpush1.msra.mxu0 0.0
  %171 = vmatprep.subr.mxu0 0.0
  %172 = vmatpush1.msra.mxu0 0.0
  %173 = vmatprep.subr.mxu0 0.0
  %174 = vmatpush1.msra.mxu0 0.0
  %175 = vmatprep.subr.mxu0 0.0
  %176 = vmatpush1.msra.mxu0 0.0
  %177 = vmatprep.subr.mxu0 0.0
  %178 = vmatpush1.msra.mxu0 0.0
  %179 = vmatprep.subr.mxu0 0.0
  %180 = vmatpush1.msra.mxu0 0.0
  %181 = vmatprep.subr.mxu0 0.0
  %182 = vmatpush1.msra.mxu0 0.0
  %183 = vmatprep.subr.mxu0 0.0
  %184 = vmatpush1.msra.mxu0 0.0
  %185 = vmatprep.subr.mxu0 0.0
  %186 = vmatpush1.msra.mxu0 0.0
  %187 = vmatprep.subr.mxu0 0.0
  %188 = vmatpush1.msra.mxu0 0.0
  %189 = vmatprep.subr.mxu0 0.0
  %190 = vmatpush1.msra.mxu0 0.0
  %191 = vmatprep.subr.mxu0 0.0
  %192 = vmatpush1.msra.mxu0 0.0
  %193 = vmatprep.subr.mxu0 0.0
  %194 = vmatpush1.msra.mxu0 0.0
  %195 = vmatprep.subr.mxu0 0.0
  %196 = vmatpush1.msra.mxu0 0.0
  %197 = vmatprep.subr.mxu0 0.0
  %198 = vmatpush1.msra.mxu0 0.0
  %199 = vmatprep.subr.mxu0 0.0
  %200 = vmatpush1.msra.mxu0 0.0
  %201 = vmatprep.mubr.f32.mxu0 0.0
  %202 = vmatmul.mubr.f32.gmra.mrb[0].mxu0 %v135
  %v203 = vpop.f32.mrb[0].mxu0
  %v204 = vadd.f32 %v132, %v203
  %v205 = vpop.f32.mrb[0].mxu0
  %206 = vdwg.mxu0
  %v207 = vmul.f32 %v204, 0.5
  %v208 = vtanh.pop %v207
  %v209 = vmul.f32 %v208, 0.5
  %v210 = vadd.f32 %v209, 0.5
  %v211 = vlaneseq
  %v212 = vshrl.u32 %v211, 7
  %v213 = vsub.s32 0, %v212
  %v214 = vrot.slane %v50, %v213
  %vm215 = vcmask 523264
  %v217 = vsel %vm215, %v210, 0
  %219 = vmatprep.subr.mxu0 0.0
  %220 = vmatpush1.msra.mxu0 %v40
  %221 = vmatprep.subr.mxu0 0.0
  %222 = vmatpush1.msra.mxu0 %v41
  %223 = vmatprep.subr.mxu0 0.0
  %224 = vmatpush1.msra.mxu0 %v42
  %225 = vmatprep.subr.mxu0 0.0
  %226 = vmatpush1.msra.mxu0 %v43
  %227 = vmatprep.subr.mxu0 0.0
  %228 = vmatpush1.msra.mxu0 %v44
  %229 = vmatprep.subr.mxu0 0.0
  %230 = vmatpush1.msra.mxu0 %v45
  %231 = vmatprep.subr.mxu0 0.0
  %232 = vmatpush1.msra.mxu0 %v46
  %233 = vmatprep.subr.mxu0 0.0
  %234 = vmatpush1.msra.mxu0 %v47
  %235 = vmatprep.subr.mxu0 0.0
  %236 = vmatpush1.msra.mxu0 0.0
  %237 = vmatprep.subr.mxu0 0.0
  %238 = vmatpush1.msra.mxu0 0.0
  %239 = vmatprep.subr.mxu0 0.0
  %240 = vmatpush1.msra.mxu0 0.0
  %241 = vmatprep.subr.mxu0 0.0
  %242 = vmatpush1.msra.mxu0 0.0
  %243 = vmatprep.subr.mxu0 0.0
  %244 = vmatpush1.msra.mxu0 0.0
  %245 = vmatprep.subr.mxu0 0.0
  %246 = vmatpush1.msra.mxu0 0.0
  %247 = vmatprep.subr.mxu0 0.0
  %248 = vmatpush1.msra.mxu0 0.0
  %249 = vmatprep.subr.mxu0 0.0
  %250 = vmatpush1.msra.mxu0 0.0
  %251 = vmatprep.subr.mxu0 0.0
  %252 = vmatpush1.msra.mxu0 0.0
  %253 = vmatprep.subr.mxu0 0.0
  %254 = vmatpush1.msra.mxu0 0.0
  %255 = vmatprep.subr.mxu0 0.0
  %256 = vmatpush1.msra.mxu0 0.0
  %257 = vmatprep.subr.mxu0 0.0
  %258 = vmatpush1.msra.mxu0 0.0
  %259 = vmatprep.subr.mxu0 0.0
  %260 = vmatpush1.msra.mxu0 0.0
  %261 = vmatprep.subr.mxu0 0.0
  %262 = vmatpush1.msra.mxu0 0.0
  %263 = vmatprep.subr.mxu0 0.0
  %264 = vmatpush1.msra.mxu0 0.0
  %265 = vmatprep.subr.mxu0 0.0
  %266 = vmatpush1.msra.mxu0 0.0
  %267 = vmatprep.subr.mxu0 0.0
  %268 = vmatpush1.msra.mxu0 0.0
  %269 = vmatprep.subr.mxu0 0.0
  %270 = vmatpush1.msra.mxu0 0.0
  %271 = vmatprep.subr.mxu0 0.0
  %272 = vmatpush1.msra.mxu0 0.0
  %273 = vmatprep.subr.mxu0 0.0
  %274 = vmatpush1.msra.mxu0 0.0
  %275 = vmatprep.subr.mxu0 0.0
  %276 = vmatpush1.msra.mxu0 0.0
  %277 = vmatprep.subr.mxu0 0.0
  %278 = vmatpush1.msra.mxu0 0.0
  %279 = vmatprep.subr.mxu0 0.0
  %280 = vmatpush1.msra.mxu0 0.0
  %281 = vmatprep.subr.mxu0 0.0
  %282 = vmatpush1.msra.mxu0 0.0
  %283 = vmatprep.mubr.f32.mxu0 0.0
  %284 = vmatmul.mubr.f32.gmra.mrb[0].mxu0 %v217
  %v285 = vpop.f32.mrb[0].mxu0
  %v286 = vadd.f32 %v214, %v285
  %v287 = vpop.f32.mrb[0].mxu0
  %288 = vdwg.mxu0
  %v289 = vmul.f32 %v286, 0.5
  %v290 = vtanh.pop %v289
  %v291 = vmul.f32 %v290, 0.5
  %v292 = vadd.f32 %v291, 0.5
  %vm293 = vcmask 130048
  %294 = vst.msk [vmem:[%s2] sm:$0xff] %vm293, %v292
  // Predicated region
  $region10: #{mlp_forward.1} parent=0 // pred_check
    _
  $region11: #{mlp_forward.1} parent=0 // pred_check_branch
    %296 = sbr.rel (0) target = $region13
  $region12: #{mlp_forward.1} parent=0 // pred_region
    _
  $region13: #{mlp_forward.1} parent=0 // pred_fallthru
    _
  // Predicated region
  $region14: #{mlp_forward.1} parent=0 // pred_check
    _
  $region15: #{mlp_forward.1} parent=0 // pred_check_branch
    %298 = sbr.rel (0) target = $region17
  $region16: #{mlp_forward.1} parent=0 // pred_region
    _
  $region17: #{mlp_forward.1} parent=0 // pred_fallthru
    _

</llo_original>
